<compile_context>
chip_gen: v7x
topology: tpu7x:2x2x1
jax: 0.10.0
libtpu: 0.0.40
codegen_flags: <defaults>
</compile_context>

<pallas_src>
import functools

import jax
import jax.numpy as jnp
from jax import lax
from jax.experimental import pallas as pl
from jax.experimental.pallas import tpu as pltpu

EPS = 1e-5
LANE = 128


def _round_up(n, m):
    return ((n + m - 1) // m) * m


def _slab_layout(cin, planes, cout):
    """Sublane-aligned row offsets of each section in the packed param slab."""
    p8, c8 = _round_up(planes, 8), _round_up(cout, 8)
    off_wf = 0                       # [w1^T ; wd^T]   (p8+c8, cin)
    off_w2 = off_wf + p8 + c8        # 3 x w2[k]^T     (3*p8, p8)
    off_w3 = off_w2 + 3 * p8         # w3^T            (c8, p8)
    off_bn1 = off_w3 + c8            # [gamma | beta]  (p8+c8, 2)
    off_bn2 = off_bn1 + p8 + c8      # (p8, 2)
    off_bn3 = off_bn2 + p8           # (c8, 2)
    rows = off_bn3 + c8
    width = max(cin, p8, 2)
    return off_wf, off_w2, off_w3, off_bn1, off_bn2, off_bn3, rows, width


def _pack_params(p, cin, planes, cout):
    """Pack all (transposed, channel-padded) weights + BN params into one f32 slab."""
    p8, c8 = _round_up(planes, 8), _round_up(cout, 8)
    (off_wf, off_w2, off_w3,
     off_bn1, off_bn2, off_bn3, rows, width) = _slab_layout(cin, planes, cout)
    slab = jnp.zeros((rows, width), jnp.float32)
    # stage 1: fused [w1 ; wd] transposed to channel-major, sublane-padded
    slab = slab.at[off_wf:off_wf + planes, :cin].set(p["w1"].T)
    slab = slab.at[off_wf + p8:off_wf + p8 + cout, :cin].set(p["wd"].T)
    # stage 2: three (P,P) taps, transposed, each padded to (p8, p8)
    for k in range(3):
        slab = slab.at[off_w2 + k * p8:off_w2 + k * p8 + planes, :planes].set(
            p["w2"][k].T)
    # stage 3
    slab = slab.at[off_w3:off_w3 + cout, :planes].set(p["w3"].T)
    # BN params as (C, 2) columns [gamma | beta]; padded channels keep 0 gamma/beta
    slab = slab.at[off_bn1:off_bn1 + planes, 0].set(p["g1"][0])
    slab = slab.at[off_bn1:off_bn1 + planes, 1].set(p["b1"][0])
    slab = slab.at[off_bn1 + p8:off_bn1 + p8 + cout, 0].set(p["gd"][0])
    slab = slab.at[off_bn1 + p8:off_bn1 + p8 + cout, 1].set(p["bd"][0])
    slab = slab.at[off_bn2:off_bn2 + planes, 0].set(p["g2"][0])
    slab = slab.at[off_bn2:off_bn2 + planes, 1].set(p["b2"][0])
    slab = slab.at[off_bn3:off_bn3 + cout, 0].set(p["g3"][0])
    slab = slab.at[off_bn3:off_bn3 + cout, 1].set(p["b3"][0])
    return slab


def _pack_data(x_cm, L, NL, nlp):
    """Channel-major x plus host-computed boundary/validity masks, one bf16 slab."""
    cin = x_cm.shape[0]
    rows = _round_up(cin + 3, 8)
    t = jnp.arange(nlp)
    l_idx = t % L
    valid = t < NL
    d = jnp.zeros((rows, nlp), jnp.bfloat16)
    d = d.at[:cin, :NL].set(x_cm.astype(jnp.bfloat16))
    d = d.at[cin + 0, :].set(((l_idx != 0) & valid).astype(jnp.bfloat16))
    d = d.at[cin + 1, :].set(((l_idx != (L - 1)) & valid).astype(jnp.bfloat16))
    d = d.at[cin + 2, :].set(valid.astype(jnp.bfloat16))
    return d


def bottleneck1d_kernel(d_ref, p_ref, out_ref, *, L, NL, cin, planes, cout):
    p8 = _round_up(planes, 8)
    c8 = _round_up(cout, 8)
    nlp = d_ref.shape[1]
    (off_wf, off_w2, off_w3,
     off_bn1, off_bn2, off_bn3, _, _) = _slab_layout(cin, planes, cout)
    bf16, f32 = jnp.bfloat16, jnp.float32

    # --- unpack the data slab: x rows + precomputed masks (all lane vectors) ---
    x = d_ref[0:cin, :]                                   # (cin, NLp) bf16
    not_first = d_ref[cin + 0:cin + 1, :].astype(f32)     # 0 where l == 0
    not_last = d_ref[cin + 1:cin + 2, :].astype(f32)      # 0 where l == L-1
    valid = d_ref[cin + 2:cin + 3, :].astype(f32)         # 1 on real tokens

    inv_n = 1.0 / NL

    def bn_affine(y, off, c):
        # Training-mode BatchNorm1d folded into one scale/shift pass.  Stats in
        # f32; rsqrt goes to the EUP; `valid` keeps lane padding out of the
        # statistics.  TODO(synk): at real sizes compute the sums on the MXU
        # (dot with a masked ones column) and use a shifted two-pass variance.
        g = p_ref[off:off + c, 0:1]                       # (c, 1) f32
        b = p_ref[off:off + c, 1:2]
        yv = y * valid
        mean = jnp.sum(yv, axis=1, keepdims=True) * inv_n
        msq = jnp.sum(yv * y, axis=1, keepdims=True) * inv_n
        var = msq - mean * mean
        scale = g * lax.rsqrt(var + EPS)
        shift = b - mean * scale
        return y * scale + shift

    # ---- stage 1: fused conv1(1x1) + downsample conv(1x1), joint per-row BN ----
    w_first = p_ref[off_wf:off_wf + p8 + c8, 0:cin].astype(bf16)   # [w1^T; wd^T]
    h = bn_affine(jnp.dot(w_first, x, preferred_element_type=f32),
                  off_bn1, p8 + c8)                       # (p8+c8, NLp) f32
    y1 = jnp.maximum(h[:p8, :], 0.0)                      # conv1 branch -> ReLU
    identity = h[p8:, :]                                  # downsample branch

    # ---- stage 2: conv2 (k=3, stride=1, pad=1) as 3 channel-major tap matmuls
    # z2[:, t] = w2[0]^T y1[:, t-1] + w2[1]^T y1[:, t] + w2[2]^T y1[:, t+1],
    # rolled along lanes; masks zero the taps at sequence / padding boundaries
    # so nothing leaks across batch elements or into the lane padding.
    y1_prev = (pltpu.roll(y1, shift=1, axis=1) * not_first).astype(bf16)
    y1_next = (pltpu.roll(y1, shift=nlp - 1, axis=1) * not_last).astype(bf16)
    y1_mid = y1.astype(bf16)
    w2a = p_ref[off_w2 + 0 * p8:off_w2 + 1 * p8, 0:p8].astype(bf16)
    w2b = p_ref[off_w2 + 1 * p8:off_w2 + 2 * p8, 0:p8].astype(bf16)
    w2c = p_ref[off_w2 + 2 * p8:off_w2 + 3 * p8, 0:p8].astype(bf16)
    z2 = (jnp.dot(w2a, y1_prev, preferred_element_type=f32)
          + jnp.dot(w2b, y1_mid, preferred_element_type=f32)
          + jnp.dot(w2c, y1_next, preferred_element_type=f32))
    y2 = jnp.maximum(bn_affine(z2, off_bn2, p8), 0.0)

    # ---- stage 3: conv3 (1x1) + BN + residual + ReLU ----
    w3 = p_ref[off_w3:off_w3 + c8, 0:p8].astype(bf16)
    y3 = bn_affine(jnp.dot(w3, y2.astype(bf16), preferred_element_type=f32),
                   off_bn3, c8)
    out_ref[...] = jnp.maximum(y3 + identity, 0.0)        # (c8, NLp), lane-dense


def bottleneck1d(x_nlc, params):
    """x_nlc: (N, L, Cin) float32. Returns (N, L, planes*expansion) float32."""
    N, L, cin = x_nlc.shape
    planes = params["w1"].shape[1]
    cout = params["w3"].shape[1]
    NL = N * L
    nlp = _round_up(NL, LANE)
    p8, c8 = _round_up(planes, 8), _round_up(cout, 8)

    # Layout plumbing in the wrapper: channel-major (C, NL), lane-padded to 128.
    x_cm = x_nlc.reshape(NL, cin).T
    data = _pack_data(x_cm, L, NL, nlp)                    # bf16 (>=8, nlp)
    slab = _pack_params(params, cin, planes, cout)         # f32 (rows, width)

    kernel = functools.partial(bottleneck1d_kernel,
                               L=L, NL=NL, cin=cin, planes=planes, cout=cout)
    flops = 2 * NL * (cin * (planes + cout) + 3 * planes * planes + planes * cout)
    cost = pl.CostEstimate(
        flops=flops,
        transcendentals=(p8 + c8) + p8 + c8,               # per-channel rsqrt
        bytes_accessed=int(data.size) * 2 + int(slab.size) * 4 + c8 * nlp * 4)

    out = pl.pallas_call(
        kernel,
        out_shape=jax.ShapeDtypeStruct((c8, nlp), jnp.float32),
        grid=(1,),
        in_specs=[pl.BlockSpec(data.shape, lambda i: (0, 0)),
                  pl.BlockSpec(slab.shape, lambda i: (0, 0))],
        out_specs=pl.BlockSpec((c8, nlp), lambda i: (0, 0)),
        compiler_params=pltpu.CompilerParams(
            dimension_semantics=("arbitrary",),
            vmem_limit_bytes=32 * 1024 * 1024),
        cost_estimate=cost,
    )(data, slab)
    # Strip channel / lane padding, back to (N, L, Cout).
    return out[:cout, :NL].T.reshape(N, L, cout)


def bottleneck1d_reference(x_nlc, p, matmul_dtype=jnp.float32):
    """Pure-JAX reference. matmul_dtype=bfloat16 mirrors the kernel's MXU numerics."""
    N, L, Cin = x_nlc.shape
    P = p["w1"].shape[1]

    def mm(a, b):
        a = a.astype(matmul_dtype).astype(jnp.float32)
        b = b.astype(matmul_dtype).astype(jnp.float32)
        return jnp.dot(a, b, precision=lax.Precision.HIGHEST)

    def bn(y, g, b):
        m = y.mean(0, keepdims=True)
        v = ((y - m) ** 2).mean(0, keepdims=True)
        return (y - m) / jnp.sqrt(v + EPS) * g + b

    x = x_nlc.reshape(N * L, Cin)
    identity = bn(mm(x, p["wd"]), p["gd"], p["bd"])
    y1 = jnp.maximum(bn(mm(x, p["w1"]), p["g1"], p["b1"]), 0.0)
    y1p = jnp.pad(y1.reshape(N, L, P), ((0, 0), (1, 1), (0, 0)))
    acc = sum(mm(y1p[:, k:k + L, :].reshape(N * L, P), p["w2"][k]) for k in range(3))
    y2 = jnp.maximum(bn(acc, p["g2"], p["b2"]), 0.0)
    y3 = bn(mm(y2, p["w3"]), p["g3"], p["b3"])
    return jnp.maximum(y3 + identity, 0.0).reshape(N, L, -1)


if __name__ == "__main__":
    # Module config: in_planes=4, planes=4, expansion=2, stride=1
    N, L, Cin, P = 2, 16, 4, 4
    Cout = 2 * P

    key = jax.random.PRNGKey(0)
    ks = jax.random.split(key, 13)

    def nrm(k, shape, scale):
        return (scale * jax.random.normal(k, shape)).astype(jnp.float32)

    params = dict(
        w1=nrm(ks[0], (Cin, P), 0.5),                     # conv1 weight (Cin, P)
        g1=1.0 + nrm(ks[1], (1, P), 0.1), b1=nrm(ks[2], (1, P), 0.1),
        w2=nrm(ks[3], (3, P, P), 0.5),                    # conv2 weight (k, Pin, Pout)
        g2=1.0 + nrm(ks[4], (1, P), 0.1), b2=nrm(ks[5], (1, P), 0.1),
        w3=nrm(ks[6], (P, Cout), 0.5),                    # conv3 weight (P, 2P)
        g3=1.0 + nrm(ks[7], (1, Cout), 0.1), b3=nrm(ks[8], (1, Cout), 0.1),
        wd=nrm(ks[9], (Cin, Cout), 0.5),                  # downsample conv weight
        gd=1.0 + nrm(ks[10], (1, Cout), 0.1), bd=nrm(ks[11], (1, Cout), 0.1),
    )

    # PyTorch-style NCL input, converted to the wrapper's (N, L, C) layout.
    x_ncl = jax.random.normal(ks[12], (N, Cin, L), dtype=jnp.float32)
    x_nlc = jnp.transpose(x_ncl, (0, 2, 1))

    out = jax.block_until_ready(bottleneck1d(x_nlc, params))
    assert out.shape == (N, L, Cout), out.shape

    # Strict check against a reference mirroring the kernel's numerics
    # (bf16 matmul operands, f32 accumulation / BN statistics).
    ref_bf16 = bottleneck1d_reference(x_nlc, params, matmul_dtype=jnp.bfloat16)
    err_bf16 = float(jnp.max(jnp.abs(out - ref_bf16)))
    assert jnp.allclose(out, ref_bf16, atol=2e-2, rtol=2e-2), err_bf16

    # Looser semantic sanity check against the pure-f32 reference
    # (difference is just bf16 MXU operand rounding).
    ref_f32 = bottleneck1d_reference(x_nlc, params, matmul_dtype=jnp.float32)
    err_f32 = float(jnp.max(jnp.abs(out - ref_f32)))
    assert jnp.allclose(out, ref_f32, atol=2e-1, rtol=2e-1), err_f32

    print("KERNEL_OK")
</pallas_src>

<mosaic_0001>
module attributes {stable_mosaic.version = 11 : i64} {
  func.func @bottleneck1d_kernel(%arg0: i32, %arg1: memref<8x128xbf16, #tpu.memory_space<vmem>>, %arg2: memref<80x8xf32, #tpu.memory_space<vmem>>, %arg3: memref<8x128xf32, #tpu.memory_space<vmem>>) attributes {dimension_semantics = [#tpu.dimension_semantics<arbitrary>], iteration_bounds = array<i64: 1>, scalar_prefetch = 0 : i64, scratch_operands = 0 : i64, tpu.core_type = #tpu.core_type<tc>, window_params = [{pipeline_mode = #tpu.pipeline_mode<synchronous>, transform_indices = @transform_0, window_bounds = array<i64: 8, 128>}, {pipeline_mode = #tpu.pipeline_mode<synchronous>, transform_indices = @transform_1, window_bounds = array<i64: 80, 8>}, {pipeline_mode = #tpu.pipeline_mode<synchronous>, transform_indices = @transform_2, window_bounds = array<i64: 8, 128>}]} {
    %c0 = arith.constant 0 : index
    %c0_0 = arith.constant 0 : index
    %0 = vector.load %arg1[%c0, %c0_0] : memref<8x128xbf16, #tpu.memory_space<vmem>>, vector<4x128xbf16>
    %c4 = arith.constant 4 : index
    %c0_1 = arith.constant 0 : index
    %1 = vector.load %arg1[%c4, %c0_1] : memref<8x128xbf16, #tpu.memory_space<vmem>>, vector<1x128xbf16>
    %2 = arith.extf %1 : vector<1x128xbf16> to vector<1x128xf32>
    %c5 = arith.constant 5 : index
    %c0_2 = arith.constant 0 : index
    %3 = vector.load %arg1[%c5, %c0_2] : memref<8x128xbf16, #tpu.memory_space<vmem>>, vector<1x128xbf16>
    %4 = arith.extf %3 : vector<1x128xbf16> to vector<1x128xf32>
    %c6 = arith.constant 6 : index
    %c0_3 = arith.constant 0 : index
    %5 = vector.load %arg1[%c6, %c0_3] : memref<8x128xbf16, #tpu.memory_space<vmem>>, vector<1x128xbf16>
    %6 = arith.extf %5 : vector<1x128xbf16> to vector<1x128xf32>
    %c0_4 = arith.constant 0 : index
    %c0_5 = arith.constant 0 : index
    %7 = vector.load %arg2[%c0_4, %c0_5] : memref<80x8xf32, #tpu.memory_space<vmem>>, vector<16x4xf32>
    %8 = arith.truncf %7 : vector<16x4xf32> to vector<16x4xbf16>
    %cst = arith.constant dense<0.000000e+00> : vector<16x128xf32>
    %9 = tpu.matmul %8, %0, %cst {dimension_numbers = #tpu.dot_dimension_numbers<[1], [0], [0], [1], [0, 0, 1, 1], [], []>} : vector<16x4xbf16>, vector<4x128xbf16>, vector<16x128xf32> -> vector<16x128xf32>
    %c48 = arith.constant 48 : index
    %c0_6 = arith.constant 0 : index
    %10 = vector.load %arg2[%c48, %c0_6] : memref<80x8xf32, #tpu.memory_space<vmem>>, vector<16x1xf32>
    %c48_7 = arith.constant 48 : index
    %c1 = arith.constant 1 : index
    %11 = vector.load %arg2[%c48_7, %c1] : memref<80x8xf32, #tpu.memory_space<vmem>>, vector<16x1xf32>
    %12 = vector.broadcast %6 : vector<1x128xf32> to vector<16x128xf32>
    %13 = arith.mulf %9, %12 : vector<16x128xf32>
    %cst_8 = arith.constant dense<0.000000e+00> : vector<16xf32>
    %14 = vector.multi_reduction <add>, %13, %cst_8 [1] : vector<16x128xf32> to vector<16xf32>
    %15 = vector.shape_cast %14 : vector<16xf32> to vector<16x1xf32>
    %cst_9 = arith.constant 3.125000e-02 : f32
    %16 = vector.broadcast %cst_9 : f32 to vector<16x1xf32>
    %17 = arith.mulf %15, %16 : vector<16x1xf32>
    %18 = arith.mulf %13, %9 : vector<16x128xf32>
    %cst_10 = arith.constant dense<0.000000e+00> : vector<16xf32>
    %19 = vector.multi_reduction <add>, %18, %cst_10 [1] : vector<16x128xf32> to vector<16xf32>
    %20 = vector.shape_cast %19 : vector<16xf32> to vector<16x1xf32>
    %cst_11 = arith.constant 3.125000e-02 : f32
    %21 = vector.broadcast %cst_11 : f32 to vector<16x1xf32>
    %22 = arith.mulf %20, %21 : vector<16x1xf32>
    %23 = arith.mulf %17, %17 : vector<16x1xf32>
    %24 = arith.subf %22, %23 : vector<16x1xf32>
    %cst_12 = arith.constant 9.99999974E-6 : f32
    %25 = vector.broadcast %cst_12 : f32 to vector<16x1xf32>
    %26 = arith.addf %24, %25 : vector<16x1xf32>
    %27 = math.rsqrt %26 : vector<16x1xf32>
    %28 = arith.mulf %10, %27 : vector<16x1xf32>
    %29 = arith.mulf %17, %28 : vector<16x1xf32>
    %30 = arith.subf %11, %29 : vector<16x1xf32>
    %31 = vector.broadcast %28 : vector<16x1xf32> to vector<16x128xf32>
    %32 = arith.mulf %9, %31 : vector<16x128xf32>
    %33 = vector.broadcast %30 : vector<16x1xf32> to vector<16x128xf32>
    %34 = arith.addf %32, %33 : vector<16x128xf32>
    %35 = vector.extract_strided_slice %34 {offsets = [0, 0], sizes = [8, 128], strides = [1, 1]} : vector<16x128xf32> to vector<8x128xf32>
    %cst_13 = arith.constant 0.000000e+00 : f32
    %36 = vector.broadcast %cst_13 : f32 to vector<8x128xf32>
    %37 = arith.maximumf %35, %36 : vector<8x128xf32>
    %38 = vector.extract_strided_slice %34 {offsets = [8, 0], sizes = [8, 128], strides = [1, 1]} : vector<16x128xf32> to vector<8x128xf32>
    %c1_i32 = arith.constant 1 : i32
    %39 = tpu.dynamic_rotate %37 by %c1_i32 dim 1 : vector<8x128xf32>, i32 -> vector<8x128xf32>
    %40 = vector.broadcast %2 : vector<1x128xf32> to vector<8x128xf32>
    %41 = arith.mulf %39, %40 : vector<8x128xf32>
    %42 = arith.truncf %41 : vector<8x128xf32> to vector<8x128xbf16>
    %c127_i32 = arith.constant 127 : i32
    %43 = tpu.dynamic_rotate %37 by %c127_i32 dim 1 : vector<8x128xf32>, i32 -> vector<8x128xf32>
    %44 = vector.broadcast %4 : vector<1x128xf32> to vector<8x128xf32>
    %45 = arith.mulf %43, %44 : vector<8x128xf32>
    %46 = arith.truncf %45 : vector<8x128xf32> to vector<8x128xbf16>
    %47 = arith.truncf %37 : vector<8x128xf32> to vector<8x128xbf16>
    %c16 = arith.constant 16 : index
    %c0_14 = arith.constant 0 : index
    %48 = vector.load %arg2[%c16, %c0_14] : memref<80x8xf32, #tpu.memory_space<vmem>>, vector<8x8xf32>
    %49 = arith.truncf %48 : vector<8x8xf32> to vector<8x8xbf16>
    %c24 = arith.constant 24 : index
    %c0_15 = arith.constant 0 : index
    %50 = vector.load %arg2[%c24, %c0_15] : memref<80x8xf32, #tpu.memory_space<vmem>>, vector<8x8xf32>
    %51 = arith.truncf %50 : vector<8x8xf32> to vector<8x8xbf16>
    %c32 = arith.constant 32 : index
    %c0_16 = arith.constant 0 : index
    %52 = vector.load %arg2[%c32, %c0_16] : memref<80x8xf32, #tpu.memory_space<vmem>>, vector<8x8xf32>
    %53 = arith.truncf %52 : vector<8x8xf32> to vector<8x8xbf16>
    %cst_17 = arith.constant dense<0.000000e+00> : vector<8x128xf32>
    %54 = tpu.matmul %49, %42, %cst_17 {dimension_numbers = #tpu.dot_dimension_numbers<[1], [0], [0], [1], [0, 0, 1, 1], [], []>} : vector<8x8xbf16>, vector<8x128xbf16>, vector<8x128xf32> -> vector<8x128xf32>
    %cst_18 = arith.constant dense<0.000000e+00> : vector<8x128xf32>
    %55 = tpu.matmul %51, %47, %cst_18 {dimension_numbers = #tpu.dot_dimension_numbers<[1], [0], [0], [1], [0, 0, 1, 1], [], []>} : vector<8x8xbf16>, vector<8x128xbf16>, vector<8x128xf32> -> vector<8x128xf32>
    %56 = arith.addf %54, %55 : vector<8x128xf32>
    %cst_19 = arith.constant dense<0.000000e+00> : vector<8x128xf32>
    %57 = tpu.matmul %53, %46, %cst_19 {dimension_numbers = #tpu.dot_dimension_numbers<[1], [0], [0], [1], [0, 0, 1, 1], [], []>} : vector<8x8xbf16>, vector<8x128xbf16>, vector<8x128xf32> -> vector<8x128xf32>
    %58 = arith.addf %56, %57 : vector<8x128xf32>
    %c64 = arith.constant 64 : index
    %c0_20 = arith.constant 0 : index
    %59 = vector.load %arg2[%c64, %c0_20] : memref<80x8xf32, #tpu.memory_space<vmem>>, vector<8x1xf32>
    %c64_21 = arith.constant 64 : index
    %c1_22 = arith.constant 1 : index
    %60 = vector.load %arg2[%c64_21, %c1_22] : memref<80x8xf32, #tpu.memory_space<vmem>>, vector<8x1xf32>
    %61 = vector.broadcast %6 : vector<1x128xf32> to vector<8x128xf32>
    %62 = arith.mulf %58, %61 : vector<8x128xf32>
    %cst_23 = arith.constant dense<0.000000e+00> : vector<8xf32>
    %63 = vector.multi_reduction <add>, %62, %cst_23 [1] : vector<8x128xf32> to vector<8xf32>
    %64 = vector.shape_cast %63 : vector<8xf32> to vector<8x1xf32>
    %cst_24 = arith.constant 3.125000e-02 : f32
    %65 = vector.broadcast %cst_24 : f32 to vector<8x1xf32>
    %66 = arith.mulf %64, %65 : vector<8x1xf32>
    %67 = arith.mulf %62, %58 : vector<8x128xf32>
    %cst_25 = arith.constant dense<0.000000e+00> : vector<8xf32>
    %68 = vector.multi_reduction <add>, %67, %cst_25 [1] : vector<8x128xf32> to vector<8xf32>
    %69 = vector.shape_cast %68 : vector<8xf32> to vector<8x1xf32>
    %cst_26 = arith.constant 3.125000e-02 : f32
    %70 = vector.broadcast %cst_26 : f32 to vector<8x1xf32>
    %71 = arith.mulf %69, %70 : vector<8x1xf32>
    %72 = arith.mulf %66, %66 : vector<8x1xf32>
    %73 = arith.subf %71, %72 : vector<8x1xf32>
    %cst_27 = arith.constant 9.99999974E-6 : f32
    %74 = vector.broadcast %cst_27 : f32 to vector<8x1xf32>
    %75 = arith.addf %73, %74 : vector<8x1xf32>
    %76 = math.rsqrt %75 : vector<8x1xf32>
    %77 = arith.mulf %59, %76 : vector<8x1xf32>
    %78 = arith.mulf %66, %77 : vector<8x1xf32>
    %79 = arith.subf %60, %78 : vector<8x1xf32>
    %80 = vector.broadcast %77 : vector<8x1xf32> to vector<8x128xf32>
    %81 = arith.mulf %58, %80 : vector<8x128xf32>
    %82 = vector.broadcast %79 : vector<8x1xf32> to vector<8x128xf32>
    %83 = arith.addf %81, %82 : vector<8x128xf32>
    %cst_28 = arith.constant 0.000000e+00 : f32
    %84 = vector.broadcast %cst_28 : f32 to vector<8x128xf32>
    %85 = arith.maximumf %83, %84 : vector<8x128xf32>
    %c40 = arith.constant 40 : index
    %c0_29 = arith.constant 0 : index
    %86 = vector.load %arg2[%c40, %c0_29] : memref<80x8xf32, #tpu.memory_space<vmem>>, vector<8x8xf32>
    %87 = arith.truncf %86 : vector<8x8xf32> to vector<8x8xbf16>
    %88 = arith.truncf %85 : vector<8x128xf32> to vector<8x128xbf16>
    %cst_30 = arith.constant dense<0.000000e+00> : vector<8x128xf32>
    %89 = tpu.matmul %87, %88, %cst_30 {dimension_numbers = #tpu.dot_dimension_numbers<[1], [0], [0], [1], [0, 0, 1, 1], [], []>} : vector<8x8xbf16>, vector<8x128xbf16>, vector<8x128xf32> -> vector<8x128xf32>
    %c72 = arith.constant 72 : index
    %c0_31 = arith.constant 0 : index
    %90 = vector.load %arg2[%c72, %c0_31] : memref<80x8xf32, #tpu.memory_space<vmem>>, vector<8x1xf32>
    %c72_32 = arith.constant 72 : index
    %c1_33 = arith.constant 1 : index
    %91 = vector.load %arg2[%c72_32, %c1_33] : memref<80x8xf32, #tpu.memory_space<vmem>>, vector<8x1xf32>
    %92 = vector.broadcast %6 : vector<1x128xf32> to vector<8x128xf32>
    %93 = arith.mulf %89, %92 : vector<8x128xf32>
    %cst_34 = arith.constant dense<0.000000e+00> : vector<8xf32>
    %94 = vector.multi_reduction <add>, %93, %cst_34 [1] : vector<8x128xf32> to vector<8xf32>
    %95 = vector.shape_cast %94 : vector<8xf32> to vector<8x1xf32>
    %cst_35 = arith.constant 3.125000e-02 : f32
    %96 = vector.broadcast %cst_35 : f32 to vector<8x1xf32>
    %97 = arith.mulf %95, %96 : vector<8x1xf32>
    %98 = arith.mulf %93, %89 : vector<8x128xf32>
    %cst_36 = arith.constant dense<0.000000e+00> : vector<8xf32>
    %99 = vector.multi_reduction <add>, %98, %cst_36 [1] : vector<8x128xf32> to vector<8xf32>
    %100 = vector.shape_cast %99 : vector<8xf32> to vector<8x1xf32>
    %cst_37 = arith.constant 3.125000e-02 : f32
    %101 = vector.broadcast %cst_37 : f32 to vector<8x1xf32>
    %102 = arith.mulf %100, %101 : vector<8x1xf32>
    %103 = arith.mulf %97, %97 : vector<8x1xf32>
    %104 = arith.subf %102, %103 : vector<8x1xf32>
    %cst_38 = arith.constant 9.99999974E-6 : f32
    %105 = vector.broadcast %cst_38 : f32 to vector<8x1xf32>
    %106 = arith.addf %104, %105 : vector<8x1xf32>
    %107 = math.rsqrt %106 : vector<8x1xf32>
    %108 = arith.mulf %90, %107 : vector<8x1xf32>
    %109 = arith.mulf %97, %108 : vector<8x1xf32>
    %110 = arith.subf %91, %109 : vector<8x1xf32>
    %111 = vector.broadcast %108 : vector<8x1xf32> to vector<8x128xf32>
    %112 = arith.mulf %89, %111 : vector<8x128xf32>
    %113 = vector.broadcast %110 : vector<8x1xf32> to vector<8x128xf32>
    %114 = arith.addf %112, %113 : vector<8x128xf32>
    %115 = arith.addf %114, %38 : vector<8x128xf32>
    %cst_39 = arith.constant 0.000000e+00 : f32
    %116 = vector.broadcast %cst_39 : f32 to vector<8x128xf32>
    %117 = arith.maximumf %115, %116 : vector<8x128xf32>
    %c0_40 = arith.constant 0 : index
    %c0_41 = arith.constant 0 : index
    %118 = vector.load %arg3[%c0_40, %c0_41] : memref<8x128xf32, #tpu.memory_space<vmem>>, vector<8x128xf32>
    tpu.vector_store %arg3[%c0_40, %c0_41], %117 {strides = array<i32>} : memref<8x128xf32, #tpu.memory_space<vmem>>, vector<8x128xf32>,
    return
  }
  func.func @transform_0(%arg0: i32) -> (i32, i32) {
    %c0_i32 = arith.constant 0 : i32
    %c0_i32_0 = arith.constant 0 : i32
    %c0_i32_1 = arith.constant 0 : i32
    return %c0_i32, %c0_i32_0 : i32, i32
  }
  func.func @transform_1(%arg0: i32) -> (i32, i32) {
    %c0_i32 = arith.constant 0 : i32
    %c0_i32_0 = arith.constant 0 : i32
    %c0_i32_1 = arith.constant 0 : i32
    return %c0_i32, %c0_i32_0 : i32, i32
  }
  func.func @transform_2(%arg0: i32) -> (i32, i32) {
    %c0_i32 = arith.constant 0 : i32
    %c0_i32_0 = arith.constant 0 : i32
    %c0_i32_1 = arith.constant 0 : i32
    return %c0_i32, %c0_i32_0 : i32, i32
  }
}

</mosaic_0001>

<llo_original>
// kernel: tpu_custom_call.1
$region0: #{tpu_custom_call.1}
  #allocation0 [shape = 'u32[]', space=smem, size = 0x4, offset = 0x4, fixed_abs, tag = 'smem constant byte address 0x4 - core index']
  #allocation1 [shape = 'u32[144,128]{1,0:T(1,128)}', space=vmem, size = 0x12000, scoped, tag = 'internal scratch']
  %s0 = inlined_call_operand.vmem [shape: bf16[8,128], index: 0, kind: input, shape index: {}]
  %s1 = inlined_call_operand.vmem [shape: f32[80,8], index: 1, kind: input, shape index: {}]
  %s2 = inlined_call_operand.hbm [shape: f32[8,128], index: 2, kind: output, shape index: {}]
  %s3 = sld [smem:[#allocation0]]
  $region18: #{tpu_custom_call.1} parent=0
    _
  %s5 = ssub.s32 1, %s3
  %s6 = scalar_select 0, %s5, %s3
  $region1: #{tpu_custom_call.1} parent=0
    #allocation2 [shape = 'u8[4096]{0}', space=vmem, size = 0x1000, scoped, tag = 'output window, operand 0, single buffered']
    #allocation3 [shape = 's32[1]{0}', space=sflag, size = 0x4, scoped, tag = 'scoped memory for tpu_custom_call.1']
    %7 = vsyncpa [#allocation3], 0
    // Predicated region
    $region2: #{tpu_custom_call.1} parent=1 // pred_check
      _
    $region3: #{tpu_custom_call.1} parent=1 // pred_check_branch
      %9 = sbr.rel (0) target = $region5
    $region4: #{tpu_custom_call.1} parent=1 // pred_region
      _
    $region5: #{tpu_custom_call.1} parent=1 // pred_fallthru
      _
    // Predicated region
    $region6: #{tpu_custom_call.1} parent=1 // pred_check
      _
    $region7: #{tpu_custom_call.1} parent=1 // pred_check_branch
      %11 = sbr.rel (0) target = $region9
    $region8: #{tpu_custom_call.1} parent=1 // pred_region
      _
    $region9: #{tpu_custom_call.1} parent=1 // pred_fallthru
      _
    %v13 = vld [vmem:[%s0] sm:$0x3]
    %v14 = vld [vmem:[%s0] sm:$0x4]
    %v15 = vunpack.c.l.bf16 %v14
    %v16 = vld [vmem:[%s0] sm:$0x8]
    %v17 = vunpack.c.l.bf16 %v16
    %v18 = vld [vmem:[%s1] sm:$0xff]
    %v19 = vld [vmem:[%s1 + $0x8] sm:$0xff]
    %v20 = vpack.c.bf16 %v19, %v18
    %vm21 = vcmask 31744
    %v23 = vsel %vm21, %v20, 0
    %vm25 = vcmask 1041408
    %v27 = vsel %vm25, %v13, 0
    %29 = vmatprep.subr.bf16.mxu0 0
    %30 = vmatpush1.bf16.msra.mxu0 %v27
    %31 = vmatprep.subr.bf16.mxu0 0
    %32 = vmatpush1.bf16.msra.mxu0 0
    %33 = vmatprep.subr.bf16.mxu0 0
    %34 = vmatpush1.bf16.msra.mxu0 0
    %35 = vmatprep.subr.bf16.mxu0 0
    %36 = vmatpush1.bf16.msra.mxu0 0
    %37 = vmatprep.subr.bf16.mxu0 0
    %38 = vmatpush1.bf16.msra.mxu0 0
    %39 = vmatprep.subr.bf16.mxu0 0
    %40 = vmatpush1.bf16.msra.mxu0 0
    %41 = vmatprep.subr.bf16.mxu0 0
    %42 = vmatpush1.bf16.msra.mxu0 0
    %43 = vmatprep.subr.bf16.mxu0 0
    %44 = vmatpush1.bf16.msra.mxu0 0
    %45 = vmatprep.subr.bf16.mxu0 0
    %46 = vmatpush1.bf16.msra.mxu0 0
    %47 = vmatprep.subr.bf16.mxu0 0
    %48 = vmatpush1.bf16.msra.mxu0 0
    %49 = vmatprep.subr.bf16.mxu0 0
    %50 = vmatpush1.bf16.msra.mxu0 0
    %51 = vmatprep.subr.bf16.mxu0 0
    %52 = vmatpush1.bf16.msra.mxu0 0
    %53 = vmatprep.subr.bf16.mxu0 0
    %54 = vmatpush1.bf16.msra.mxu0 0
    %55 = vmatprep.subr.bf16.mxu0 0
    %56 = vmatpush1.bf16.msra.mxu0 0
    %57 = vmatprep.subr.bf16.mxu0 0
    %58 = vmatpush1.bf16.msra.mxu0 0
    %59 = vmatprep.subr.bf16.mxu0 0
    %60 = vmatpush1.bf16.msra.mxu0 0
    %61 = vmatprep.mubr.bf16.mxu0 0
    %62 = vmatmul.mubr.bf16.gmra.mrb[0].mxu0 %v23
    %v63 = vpop.f32.mrb[0].mxu0
    %v64 = vadd.f32 0.0, %v63
    %v65 = vpop.f32.mrb[0].mxu0
    %v66 = vpop.f32.mrb[0].mxu0
    %v67 = vadd.f32 0.0, %v66
    %v68 = vpop.f32.mrb[0].mxu0
    %69 = vdwg.mxu0
    %v70 = vld [vmem:[%s1 + $0x30] sm:$0xff]
    %v71 = vld [vmem:[%s1 + $0x38] sm:$0xff]
    %v72 = vlaneseq
    %v73 = vshrl.u32 %v72, 7
    %v74 = vsub.s32 6, %v73
    %v75 = vrot.slane %v17, %v74
    %v76 = vmul.f32 %v64, %v75
    %v77 = vmul.f32 %v67, %v75
    %78 = vadd.xlane.f32.xlu0 %v76
    %v79 = vpop.xlane.xlu0 %78
    %80 = vadd.xlane.f32.xlu0 %v77
    %v81 = vpop.xlane.xlu0 %80
    %v82 = vmul.f32 %v79, 0.03125
    %v83 = vmul.f32 %v81, 0.03125
    %v84 = vmul.f32 %v76, %v64
    %v85 = vmul.f32 %v77, %v67
    %86 = vadd.xlane.f32.xlu0 %v84
    %v87 = vpop.xlane.xlu0 %86
    %88 = vadd.xlane.f32.xlu0 %v85
    %v89 = vpop.xlane.xlu0 %88
    %v90 = vmul.f32 %v87, 0.03125
    %v91 = vmul.f32 %v89, 0.03125
    %v92 = vmul.f32 %v82, %v82
    %v93 = vmul.f32 %v83, %v83
    %v94 = vsub.f32 %v90, %v92
    %v95 = vsub.f32 %v91, %v93
    %v96 = vadd.f32 %v94, 1e-05
    %v97 = vadd.f32 %v95, 1e-05
    %v98 = vrsqrt.pop %v96
    %v99 = vrsqrt.pop %v97
    %v100 = vmul.f32 %v70, %v98
    %v101 = vmul.f32 %v71, %v99
    %v102 = vmul.f32 %v82, %v100
    %v103 = vmul.f32 %v83, %v101
    %106 = vrot.lane.b32.xlu0 %v102, 1
    %v107 = vpop.permute.xlu0 %106
    %108 = vrot.lane.b32.xlu0 %v103, 1
    %v109 = vpop.permute.xlu0 %108
    %v112 = vsub.f32 %v70, %v107
    %v113 = vsub.f32 %v71, %v109
    %115 = vset.pattern.permute.xlu0 0
    %116 = vperm.xlu0 %115, %v100
    %v117 = vpop.permute.xlu0 %116
    %120 = vset.pattern.permute.xlu0 0
    %121 = vperm.xlu0 %120, %v101
    %v122 = vpop.permute.xlu0 %121
    %v124 = vmul.f32 %v64, %v117
    %v125 = vmul.f32 %v67, %v122
    %127 = vset.pattern.permute.xlu0 1
    %128 = vperm.xlu0 %127, %v112
    %v129 = vpop.permute.xlu0 %128
    %132 = vset.pattern.permute.xlu0 1
    %133 = vperm.xlu0 %132, %v113
    %v134 = vpop.permute.xlu0 %133
    %v136 = vadd.f32 %v124, %v129
    %v137 = vadd.f32 %v125, %v134
    %v138 = vmax.f32 %v136, 0.0
    %139 = vrot.lane.b32.xlu0 %v138, 1
    %v140 = vpop.permute.xlu0 %139
    %v141 = vlaneseq
    %v142 = vshrl.u32 %v141, 7
    %v143 = vsub.s32 4, %v142
    %v144 = vrot.slane %v15, %v143
    %v145 = vmul.f32 %v140, %v144
    %v146 = vpack.c.bf16 %v145, %v145
    %147 = vrot.lane.b32.xlu0 %v138, 127
    %v148 = vpop.permute.xlu0 %147
    %v149 = vlaneseq
    %v150 = vshrl.u32 %v149, 7
    %v151 = vsub.s32 5, %v150
    %v152 = vrot.slane %v15, %v151
    %v153 = vmul.f32 %v148, %v152
    %v154 = vpack.c.bf16 %v153, %v153
    %v155 = vpack.c.bf16 %v138, %v138
    %v156 = vld [vmem:[%s1 + $0x10] sm:$0xff]
    %v157 = vpack.c.bf16 %v156, %v156
    %v158 = vld [vmem:[%s1 + $0x18] sm:$0xff]
    %v159 = vpack.c.bf16 %v158, %v158
    %v160 = vld [vmem:[%s1 + $0x20] sm:$0xff]
    %v161 = vpack.c.bf16 %v160, %v160
    %vm162 = vcmask 64512
    %v164 = vsel %vm162, %v159, 0
    %vm166 = vcmask 1043456
    %v168 = vsel %vm166, %v155, 0
    %170 = vmatprep.subr.bf16.mxu0 0
    %171 = vmatpush1.bf16.msra.mxu0 %v168
    %172 = vmatprep.subr.bf16.mxu0 0
    %173 = vmatpush1.bf16.msra.mxu0 0
    %174 = vmatprep.subr.bf16.mxu0 0
    %175 = vmatpush1.bf16.msra.mxu0 0
    %176 = vmatprep.subr.bf16.mxu0 0
    %177 = vmatpush1.bf16.msra.mxu0 0
    %178 = vmatprep.subr.bf16.mxu0 0
    %179 = vmatpush1.bf16.msra.mxu0 0
    %180 = vmatprep.subr.bf16.mxu0 0
    %181 = vmatpush1.bf16.msra.mxu0 0
    %182 = vmatprep.subr.bf16.mxu0 0
    %183 = vmatpush1.bf16.msra.mxu0 0
    %184 = vmatprep.subr.bf16.mxu0 0
    %185 = vmatpush1.bf16.msra.mxu0 0
    %186 = vmatprep.subr.bf16.mxu0 0
    %187 = vmatpush1.bf16.msra.mxu0 0
    %188 = vmatprep.subr.bf16.mxu0 0
    %189 = vmatpush1.bf16.msra.mxu0 0
    %190 = vmatprep.subr.bf16.mxu0 0
    %191 = vmatpush1.bf16.msra.mxu0 0
    %192 = vmatprep.subr.bf16.mxu0 0
    %193 = vmatpush1.bf16.msra.mxu0 0
    %194 = vmatprep.subr.bf16.mxu0 0
    %195 = vmatpush1.bf16.msra.mxu0 0
    %196 = vmatprep.subr.bf16.mxu0 0
    %197 = vmatpush1.bf16.msra.mxu0 0
    %198 = vmatprep.subr.bf16.mxu0 0
    %199 = vmatpush1.bf16.msra.mxu0 0
    %200 = vmatprep.subr.bf16.mxu0 0
    %201 = vmatpush1.bf16.msra.mxu0 0
    %202 = vmatprep.mubr.bf16.mxu0 0
    %203 = vmatmul.mubr.bf16.gmra.mrb[0].mxu0 %v164
    %v204 = vpop.f32.mrb[0].mxu0
    %v205 = vadd.f32 0.0, %v204
    %v206 = vpop.f32.mrb[0].mxu0
    %v207 = vpop.f32.mrb[0].mxu0
    %v208 = vpop.f32.mrb[0].mxu0
    %209 = vdwg.mxu0
    %v211 = vsel %vm162, %v157, 0
    %v214 = vsel %vm166, %v146, 0
    %216 = vmatprep.subr.bf16.mxu0 0
    %217 = vmatpush1.bf16.msra.mxu0 %v214
    %218 = vmatprep.subr.bf16.mxu0 0
    %219 = vmatpush1.bf16.msra.mxu0 0
    %220 = vmatprep.subr.bf16.mxu0 0
    %221 = vmatpush1.bf16.msra.mxu0 0
    %222 = vmatprep.subr.bf16.mxu0 0
    %223 = vmatpush1.bf16.msra.mxu0 0
    %224 = vmatprep.subr.bf16.mxu0 0
    %225 = vmatpush1.bf16.msra.mxu0 0
    %226 = vmatprep.subr.bf16.mxu0 0
    %227 = vmatpush1.bf16.msra.mxu0 0
    %228 = vmatprep.subr.bf16.mxu0 0
    %229 = vmatpush1.bf16.msra.mxu0 0
    %230 = vmatprep.subr.bf16.mxu0 0
    %231 = vmatpush1.bf16.msra.mxu0 0
    %232 = vmatprep.subr.bf16.mxu0 0
    %233 = vmatpush1.bf16.msra.mxu0 0
    %234 = vmatprep.subr.bf16.mxu0 0
    %235 = vmatpush1.bf16.msra.mxu0 0
    %236 = vmatprep.subr.bf16.mxu0 0
    %237 = vmatpush1.bf16.msra.mxu0 0
    %238 = vmatprep.subr.bf16.mxu0 0
    %239 = vmatpush1.bf16.msra.mxu0 0
    %240 = vmatprep.subr.bf16.mxu0 0
    %241 = vmatpush1.bf16.msra.mxu0 0
    %242 = vmatprep.subr.bf16.mxu0 0
    %243 = vmatpush1.bf16.msra.mxu0 0
    %244 = vmatprep.subr.bf16.mxu0 0
    %245 = vmatpush1.bf16.msra.mxu0 0
    %246 = vmatprep.subr.bf16.mxu0 0
    %247 = vmatpush1.bf16.msra.mxu0 0
    %248 = vmatprep.mubr.bf16.mxu0 0
    %249 = vmatmul.mubr.bf16.gmra.mrb[0].mxu0 %v211
    %v250 = vpop.f32.mrb[0].mxu0
    %v251 = vadd.f32 %v205, %v250
    %v252 = vpop.f32.mrb[0].mxu0
    %v253 = vpop.f32.mrb[0].mxu0
    %v254 = vpop.f32.mrb[0].mxu0
    %255 = vdwg.mxu0
    %v257 = vsel %vm162, %v161, 0
    %v260 = vsel %vm166, %v154, 0
    %262 = vmatprep.subr.bf16.mxu0 0
    %263 = vmatpush1.bf16.msra.mxu0 %v260
    %264 = vmatprep.subr.bf16.mxu0 0
    %265 = vmatpush1.bf16.msra.mxu0 0
    %266 = vmatprep.subr.bf16.mxu0 0
    %267 = vmatpush1.bf16.msra.mxu0 0
    %268 = vmatprep.subr.bf16.mxu0 0
    %269 = vmatpush1.bf16.msra.mxu0 0
    %270 = vmatprep.subr.bf16.mxu0 0
    %271 = vmatpush1.bf16.msra.mxu0 0
    %272 = vmatprep.subr.bf16.mxu0 0
    %273 = vmatpush1.bf16.msra.mxu0 0
    %274 = vmatprep.subr.bf16.mxu0 0
    %275 = vmatpush1.bf16.msra.mxu0 0
    %276 = vmatprep.subr.bf16.mxu0 0
    %277 = vmatpush1.bf16.msra.mxu0 0
    %278 = vmatprep.subr.bf16.mxu0 0
    %279 = vmatpush1.bf16.msra.mxu0 0
    %280 = vmatprep.subr.bf16.mxu0 0
    %281 = vmatpush1.bf16.msra.mxu0 0
    %282 = vmatprep.subr.bf16.mxu0 0
    %283 = vmatpush1.bf16.msra.mxu0 0
    %284 = vmatprep.subr.bf16.mxu0 0
    %285 = vmatpush1.bf16.msra.mxu0 0
    %286 = vmatprep.subr.bf16.mxu0 0
    %287 = vmatpush1.bf16.msra.mxu0 0
    %288 = vmatprep.subr.bf16.mxu0 0
    %289 = vmatpush1.bf16.msra.mxu0 0
    %290 = vmatprep.subr.bf16.mxu0 0
    %291 = vmatpush1.bf16.msra.mxu0 0
    %292 = vmatprep.subr.bf16.mxu0 0
    %293 = vmatpush1.bf16.msra.mxu0 0
    %294 = vmatprep.mubr.bf16.mxu0 0
    %295 = vmatmul.mubr.bf16.gmra.mrb[0].mxu0 %v257
    %v296 = vpop.f32.mrb[0].mxu0
    %v297 = vadd.f32 0.0, %v296
    %v298 = vpop.f32.mrb[0].mxu0
    %v299 = vpop.f32.mrb[0].mxu0
    %v300 = vpop.f32.mrb[0].mxu0
    %301 = vdwg.mxu0
    %v302 = vadd.f32 %v251, %v297
    %v303 = vld [vmem:[%s1 + $0x40] sm:$0xff]
    %v304 = vmul.f32 %v302, %v75
    %305 = vadd.xlane.f32.xlu0 %v304
    %v306 = vpop.xlane.xlu0 %305
    %v307 = vmul.f32 %v306, 0.03125
    %v308 = vmul.f32 %v304, %v302
    %309 = vadd.xlane.f32.xlu0 %v308
    %v310 = vpop.xlane.xlu0 %309
    %v311 = vmul.f32 %v310, 0.03125
    %v312 = vmul.f32 %v307, %v307
    %v313 = vsub.f32 %v311, %v312
    %v314 = vadd.f32 %v313, 1e-05
    %v315 = vrsqrt.pop %v314
    %v316 = vmul.f32 %v303, %v315
    %v317 = vmul.f32 %v307, %v316
    %319 = vrot.lane.b32.xlu0 %v317, 1
    %v320 = vpop.permute.xlu0 %319
    %v322 = vsub.f32 %v303, %v320
    %324 = vset.pattern.permute.xlu0 0
    %325 = vperm.xlu0 %324, %v316
    %v326 = vpop.permute.xlu0 %325
    %v328 = vmul.f32 %v302, %v326
    %330 = vset.pattern.permute.xlu0 1
    %331 = vperm.xlu0 %330, %v322
    %v332 = vpop.permute.xlu0 %331
    %v334 = vadd.f32 %v328, %v332
    %v335 = vmax.f32 %v334, 0.0
    %v336 = vld [vmem:[%s1 + $0x28] sm:$0xff]
    %v337 = vpack.c.bf16 %v336, %v336
    %v338 = vpack.c.bf16 %v335, %v335
    %v340 = vsel %vm162, %v337, 0
    %v343 = vsel %vm166, %v338, 0
    %345 = vmatprep.subr.bf16.mxu0 0
    %346 = vmatpush1.bf16.msra.mxu0 %v343
    %347 = vmatprep.subr.bf16.mxu0 0
    %348 = vmatpush1.bf16.msra.mxu0 0
    %349 = vmatprep.subr.bf16.mxu0 0
    %350 = vmatpush1.bf16.msra.mxu0 0
    %351 = vmatprep.subr.bf16.mxu0 0
    %352 = vmatpush1.bf16.msra.mxu0 0
    %353 = vmatprep.subr.bf16.mxu0 0
    %354 = vmatpush1.bf16.msra.mxu0 0
    %355 = vmatprep.subr.bf16.mxu0 0
    %356 = vmatpush1.bf16.msra.mxu0 0
    %357 = vmatprep.subr.bf16.mxu0 0
    %358 = vmatpush1.bf16.msra.mxu0 0
    %359 = vmatprep.subr.bf16.mxu0 0
    %360 = vmatpush1.bf16.msra.mxu0 0
    %361 = vmatprep.subr.bf16.mxu0 0
    %362 = vmatpush1.bf16.msra.mxu0 0
    %363 = vmatprep.subr.bf16.mxu0 0
    %364 = vmatpush1.bf16.msra.mxu0 0
    %365 = vmatprep.subr.bf16.mxu0 0
    %366 = vmatpush1.bf16.msra.mxu0 0
    %367 = vmatprep.subr.bf16.mxu0 0
    %368 = vmatpush1.bf16.msra.mxu0 0
    %369 = vmatprep.subr.bf16.mxu0 0
    %370 = vmatpush1.bf16.msra.mxu0 0
    %371 = vmatprep.subr.bf16.mxu0 0
    %372 = vmatpush1.bf16.msra.mxu0 0
    %373 = vmatprep.subr.bf16.mxu0 0
    %374 = vmatpush1.bf16.msra.mxu0 0
    %375 = vmatprep.subr.bf16.mxu0 0
    %376 = vmatpush1.bf16.msra.mxu0 0
    %377 = vmatprep.mubr.bf16.mxu0 0
    %378 = vmatmul.mubr.bf16.gmra.mrb[0].mxu0 %v340
    %v379 = vpop.f32.mrb[0].mxu0
    %v380 = vadd.f32 0.0, %v379
    %v381 = vpop.f32.mrb[0].mxu0
    %v382 = vpop.f32.mrb[0].mxu0
    %v383 = vpop.f32.mrb[0].mxu0
    %384 = vdwg.mxu0
    %v385 = vld [vmem:[%s1 + $0x48] sm:$0xff]
    %v386 = vmul.f32 %v380, %v75
    %387 = vadd.xlane.f32.xlu0 %v386
    %v388 = vpop.xlane.xlu0 %387
    %v389 = vmul.f32 %v388, 0.03125
    %v390 = vmul.f32 %v386, %v380
    %391 = vadd.xlane.f32.xlu0 %v390
    %v392 = vpop.xlane.xlu0 %391
    %v393 = vmul.f32 %v392, 0.03125
    %v394 = vmul.f32 %v389, %v389
    %v395 = vsub.f32 %v393, %v394
    %v396 = vadd.f32 %v395, 1e-05
    %v397 = vrsqrt.pop %v396
    %v398 = vmul.f32 %v385, %v397
    %v399 = vmul.f32 %v389, %v398
    %401 = vrot.lane.b32.xlu0 %v399, 1
    %v402 = vpop.permute.xlu0 %401
    %v404 = vsub.f32 %v385, %v402
    %406 = vset.pattern.permute.xlu0 0
    %407 = vperm.xlu0 %406, %v398
    %v408 = vpop.permute.xlu0 %407
    %v410 = vmul.f32 %v380, %v408
    %412 = vset.pattern.permute.xlu0 1
    %413 = vperm.xlu0 %412, %v404
    %v414 = vpop.permute.xlu0 %413
    %v416 = vadd.f32 %v410, %v414
    %v417 = vadd.f32 %v416, %v137
    %v418 = vmax.f32 %v417, 0.0
    %419 = vst [vmem:[#allocation2] sm:$0xff] %v418
    // Predicated region
    $region10: #{tpu_custom_call.1} parent=1 // pred_check
      _
    $region11: #{tpu_custom_call.1} parent=1 // pred_check_branch
      %421 = sbr.rel (0) target = $region13
    $region12: #{tpu_custom_call.1} parent=1 // pred_region
      %s423 = ssub.s32 128, 128
      %424 = vsyncadd [#allocation3], %s423
      %s426 = sshll.u32 [#allocation2], 4
      %s427 = int_to_ptr.vmem [resolvable:$true] %s426
      %429 = dma.vmem_to_hbm [thread:$0]  %s427, 128, %s2, [#allocation3]
    $region13: #{tpu_custom_call.1} parent=1 // pred_fallthru
      _
    // Predicated region
    $region14: #{tpu_custom_call.1} parent=1 // pred_check
      _
    $region15: #{tpu_custom_call.1} parent=1 // pred_check_branch
      %431 = sbr.rel (0) target = $region17
    $region16: #{tpu_custom_call.1} parent=1 // pred_region
      %432 = dma.done [#allocation3], 128
    $region17: #{tpu_custom_call.1} parent=1 // pred_fallthru
      _
    %433 = vsyncpa [#allocation3], 1

</llo_original>
